<compile_context>
chip_gen: v6e
topology: v6e:2x2x1
jax: 0.10.0
libtpu: 0.0.40
codegen_flags: <defaults>
</compile_context>

<pallas_src>
import functools

import jax
import jax.numpy as jnp
from jax.experimental import pallas as pl
from jax.experimental.pallas import tpu as pltpu


def _youtube_dnn_kernel(x_ref, w1_ref, b1_ref, w2_ref, b2_ref, item_ref, seg_ref,
                        out_ref, *, inv_temperature, eps):
    # Shapes (TB on the lane axis everywhere):
    #   x_ref    : (D_in, TB)  f32
    #   w1_ref   : (H1, D_in)  f32 (folded BN), b1_ref: (H1, 1)
    #   w2_ref   : (D_out, H1) f32 (folded BN), b2_ref: (D_out, 1)
    #   item_ref : (N*D_out, TB) bf16
    #   seg_ref  : (N, N*D_out)  f32 segment-sum matrix
    #   out_ref  : (N, TB)       f32

    # ---- user tower: (Linear + folded BN + ReLU) x 2, no output layer ----
    x = x_ref[...]
    h = jnp.dot(w1_ref[...], x, preferred_element_type=jnp.float32) + b1_ref[...]
    h = jnp.maximum(h, 0.0)
    u = jnp.dot(w2_ref[...], h, preferred_element_type=jnp.float32) + b2_ref[...]
    u = jnp.maximum(u, 0.0)                                   # (D_out, TB)

    # ---- item tower (already gathered), streamed bf16 -> upcast f32
    #      (f32 elementwise is safe on v5e's VPU as well) ----
    item = item_ref[...].astype(jnp.float32)                  # (N*D, TB)

    # ---- cosine similarity: D-reductions done on the MXU via segment-sum ----
    n_rep = item.shape[0] // u.shape[0]                       # = N_items (static)
    u_rep = jnp.tile(u, (n_rep, 1))                           # (N*D, TB)
    seg = seg_ref[...]                                        # (N, N*D)
    num = jnp.dot(seg, u_rep * item, preferred_element_type=jnp.float32)   # (N, TB)
    i_sq = jnp.dot(seg, item * item, preferred_element_type=jnp.float32)   # (N, TB)
    u_sq = jnp.sum(u * u, axis=0, keepdims=True)                           # (1, TB)

    # Note: torch.cosine_similarity clamps each norm separately with eps=1e-8;
    # here the product of squared norms is clamped at eps^2 — only differs for
    # near-zero embeddings (documented, acceptable).
    inv_norm = jax.lax.rsqrt(jnp.maximum(u_sq * i_sq, eps * eps))          # EUP
    out_ref[...] = num * inv_norm * inv_temperature                        # lane-dense store


def _fold_bn(w, b, gamma, beta, rmean, rvar, eps=1e-5):
    s = gamma / jnp.sqrt(rvar + eps)
    return w * s[None, :], (b - rmean) * s + beta


def _choose_batch_tile(B):
    # Big tiles amortize the ~0.35 us per-grid-step overhead; keep >= 2 grid
    # blocks when possible so the "parallel" batch axis can shard across
    # v7x's two TensorCores (no-op on single-TC v5e/v6e).
    for tb in (4096, 2048, 1024, 512, 256):
        if B >= 2 * tb:
            return tb
    return 128


def youtube_dnn_pallas(input_user, item_emb, mlp_params, *, temperature=1.0,
                       item_stream_dtype=jnp.bfloat16):
    """input_user: (B, D_in) f32; item_emb: (B, N_items, D_out) f32/bf16."""
    B, D_in = input_user.shape
    _, N_items, D_out = item_emb.shape
    ND = N_items * D_out

    (w1, b1, g1, be1, m1, v1), (w2, b2, g2, be2, m2, v2) = mlp_params
    w1f, b1f = _fold_bn(w1, b1, g1, be1, m1, v1)
    w2f, b2f = _fold_bn(w2, b2, g2, be2, m2, v2)
    H1, H2 = w1f.shape[1], w2f.shape[1]
    assert H2 == D_out, "MLP output dim must match item embedding dim"

    # Transposed (lane = batch) parameter layout for the kernel.
    w1t = w1f.T                               # (H1, D_in)
    b1c = b1f.reshape(H1, 1)
    w2t = w2f.T                               # (D_out, H1)
    b2c = b2f.reshape(D_out, 1)
    # Segment-sum matrix: seg[n, n'*D + d] = (n == n')
    seg = jnp.repeat(jnp.eye(N_items, dtype=jnp.float32), D_out, axis=1)  # (N, N*D)

    # ---- batch tiling / padding (pad rows are zeros -> finite scores, sliced off) ----
    TB = _choose_batch_tile(B)
    n_blocks = pl.cdiv(B, TB)
    B_pad = n_blocks * TB

    # Lane-major layout plumbing (wrapper glue; single pass over each tensor).
    x_t = input_user.T                                                     # (D_in, B)
    item_t = jnp.transpose(item_emb, (1, 2, 0)).reshape(ND, B)             # (N*D, B)
    item_t = item_t.astype(item_stream_dtype)
    if B_pad != B:
        x_t = jnp.pad(x_t, ((0, 0), (0, B_pad - B)))
        item_t = jnp.pad(item_t, ((0, 0), (0, B_pad - B)))

    kernel = functools.partial(_youtube_dnn_kernel,
                               inv_temperature=1.0 / float(temperature),
                               eps=1e-8)

    # VMEM budget derived from the actual buffers (double-buffered streamed
    # tiles + resident weights + headroom); safe under v7x's 64 MiB.
    item_bytes = jnp.dtype(item_stream_dtype).itemsize
    tile_bytes = TB * (D_in * 4 + ND * item_bytes + 8 * 4)        # x + item + out(>=8 sublanes)
    resident_bytes = 4 * (w1t.size + b1c.size + w2t.size + b2c.size + seg.size)
    vmem_limit = int(2 * tile_bytes + resident_bytes + (8 << 20))

    cost = pl.CostEstimate(
        flops=int(2 * B_pad * (D_in * H1 + H1 * D_out + 2 * N_items * ND + 2 * ND)),
        transcendentals=int(B_pad * N_items),
        bytes_accessed=int(D_in * B_pad * 4 + ND * B_pad * item_bytes
                           + resident_bytes + N_items * B_pad * 4),
    )

    out_t = pl.pallas_call(
        kernel,
        out_shape=jax.ShapeDtypeStruct((N_items, B_pad), jnp.float32),
        grid=(n_blocks,),
        in_specs=[
            pl.BlockSpec((D_in, TB), lambda i: (0, i)),        # streamed user input
            pl.BlockSpec((H1, D_in), lambda i: (0, 0)),        # resident
            pl.BlockSpec((H1, 1), lambda i: (0, 0)),           # resident
            pl.BlockSpec((D_out, H1), lambda i: (0, 0)),       # resident
            pl.BlockSpec((D_out, 1), lambda i: (0, 0)),        # resident
            pl.BlockSpec((ND, TB), lambda i: (0, i)),          # streamed items (bf16)
            pl.BlockSpec((N_items, ND), lambda i: (0, 0)),     # resident segment matrix
        ],
        out_specs=pl.BlockSpec((N_items, TB), lambda i: (0, i)),
        compiler_params=pltpu.CompilerParams(
            dimension_semantics=("parallel",),   # megacore / v7x dual-TC split
            vmem_limit_bytes=vmem_limit,
        ),
        cost_estimate=cost,
    )(x_t, w1t, b1c, w2t, b2c, item_t, seg)

    return out_t[:, :B].T                                      # (B, N_items)


if __name__ == "__main__":
    key = jax.random.PRNGKey(0)
    ks = jax.random.split(key, 10)

    # ---- synthetic feature config (small, but exercises tiling + padding) ----
    B = 200                    # -> TB=128, grid of 2 blocks, padded to 256
    n_user_feats = 2           # two sparse user features
    embed_dim = 16             # per-feature embedding dim
    D_in = n_user_feats * embed_dim   # user_dims = 32
    mlp_dims = (64, 16)        # user_params["dims"]; last dim == item embed dim
    D_out = mlp_dims[-1]
    n_neg = 3                  # negative items per sample
    user_vocabs = (100, 50)
    item_vocab = 200
    temperature = 0.5

    # ---- deterministic parameters ----
    user_tables = [
        0.1 * jax.random.normal(ks[i], (user_vocabs[i], embed_dim), jnp.float32)
        for i in range(n_user_feats)
    ]
    item_table_f32 = 0.1 * jax.random.normal(ks[2], (item_vocab, D_out), jnp.float32)
    # Store the item table in bf16 so the gather emits bf16 directly
    # (no separate astype pass over the big (B, N, D) tensor).
    item_table_bf16 = item_table_f32.astype(jnp.bfloat16)

    def make_linear_bn(k, d_in, d_out):
        kw, kb = jax.random.split(k)
        bound = 1.0 / jnp.sqrt(d_in)
        w = jax.random.uniform(kw, (d_in, d_out), jnp.float32, -bound, bound)
        b = jax.random.uniform(kb, (d_out,), jnp.float32, -bound, bound)
        gamma = jnp.ones((d_out,), jnp.float32)
        beta = jnp.zeros((d_out,), jnp.float32)
        rmean = jnp.zeros((d_out,), jnp.float32)
        rvar = jnp.ones((d_out,), jnp.float32)
        return (w, b, gamma, beta, rmean, rvar)

    mlp_params = (
        make_linear_bn(ks[3], D_in, mlp_dims[0]),
        make_linear_bn(ks[4], mlp_dims[0], mlp_dims[1]),
    )

    # ---- deterministic inputs (integer id features) ----
    user_ids = jnp.stack(
        [jax.random.randint(ks[5 + i], (B,), 0, user_vocabs[i]) for i in range(n_user_feats)],
        axis=1,
    )                                                          # (B, n_user_feats)
    pos_item_id = jax.random.randint(ks[7], (B,), 0, item_vocab)        # (B,)
    neg_item_ids = jax.random.randint(ks[8], (B, n_neg), 0, item_vocab) # (B, n_neg)

    # ---- embedding lookups (glue, plain JAX) ----
    input_user = jnp.concatenate(
        [user_tables[i][user_ids[:, i]] for i in range(n_user_feats)], axis=-1
    )                                                          # (B, D_in)
    pos_emb = item_table_bf16[pos_item_id][:, None, :]         # (B, 1, D_out) bf16
    neg_emb = item_table_bf16[neg_item_ids]                    # (B, n_neg, D_out) bf16
    item_emb_bf16 = jnp.concatenate([pos_emb, neg_emb], axis=1)  # (B, 1+n_neg, D_out)

    # ---- Pallas kernel ----
    y = youtube_dnn_pallas(input_user, item_emb_bf16, mlp_params, temperature=temperature)
    y = jax.block_until_ready(y)
    assert y.shape == (B, 1 + n_neg) and y.dtype == jnp.float32

    # ---- pure-JAX reference ----
    def ref_forward(item):
        (w1, b1, g1, be1, m1, v1), (w2, b2, g2, be2, m2, v2) = mlp_params
        h = input_user @ w1 + b1
        h = (h - m1) / jnp.sqrt(v1 + 1e-5) * g1 + be1
        h = jnp.maximum(h, 0.0)
        u = h @ w2 + b2
        u = (u - m2) / jnp.sqrt(v2 + 1e-5) * g2 + be2
        u = jnp.maximum(u, 0.0)
        dot = jnp.einsum("bd,bnd->bn", u, item)
        denom = jnp.sqrt(
            jnp.maximum(
                jnp.sum(u * u, -1, keepdims=True) * jnp.sum(item * item, -1),
                1e-16,
            )
        )
        return dot / denom / temperature

    # Tight check against the exact math the kernel performs (bf16-stored items).
    y_ref_bits = ref_forward(item_emb_bf16.astype(jnp.float32))
    assert jnp.allclose(y, y_ref_bits, atol=2e-4, rtol=2e-4), (y, y_ref_bits)

    # Loose semantic check against the full-f32 reference (f32 item table).
    item_emb_f32 = jnp.concatenate(
        [item_table_f32[pos_item_id][:, None, :], item_table_f32[neg_item_ids]], axis=1)
    y_ref_f32 = ref_forward(item_emb_f32)
    assert jnp.allclose(y, y_ref_f32, atol=2e-2, rtol=2e-2), (y, y_ref_f32)

    print("KERNEL_OK")
</pallas_src>

<mosaic_0001>
module attributes {stable_mosaic.version = 11 : i64} {
  func.func @_youtube_dnn_kernel(%arg0: i32, %arg1: memref<32x128xf32, #tpu.memory_space<vmem>>, %arg2: memref<64x32xf32, #tpu.memory_space<vmem>>, %arg3: memref<64x1xf32, #tpu.memory_space<vmem>>, %arg4: memref<16x64xf32, #tpu.memory_space<vmem>>, %arg5: memref<16x1xf32, #tpu.memory_space<vmem>>, %arg6: memref<64x128xbf16, #tpu.memory_space<vmem>>, %arg7: memref<4x64xf32, #tpu.memory_space<vmem>>, %arg8: memref<4x128xf32, #tpu.memory_space<vmem>>) attributes {dimension_semantics = [#tpu.dimension_semantics<parallel>], iteration_bounds = array<i64: 2>, scalar_prefetch = 0 : i64, scratch_operands = 0 : i64, tpu.core_type = #tpu.core_type<tc>, window_params = [{transform_indices = @transform_0, window_bounds = array<i64: 32, 128>}, {pipeline_mode = #tpu.pipeline_mode<synchronous>, transform_indices = @transform_1, window_bounds = array<i64: 64, 32>}, {pipeline_mode = #tpu.pipeline_mode<synchronous>, transform_indices = @transform_2, window_bounds = array<i64: 64, 1>}, {pipeline_mode = #tpu.pipeline_mode<synchronous>, transform_indices = @transform_3, window_bounds = array<i64: 16, 64>}, {pipeline_mode = #tpu.pipeline_mode<synchronous>, transform_indices = @transform_4, window_bounds = array<i64: 16, 1>}, {transform_indices = @transform_5, window_bounds = array<i64: 64, 128>}, {pipeline_mode = #tpu.pipeline_mode<synchronous>, transform_indices = @transform_6, window_bounds = array<i64: 4, 64>}, {transform_indices = @transform_7, window_bounds = array<i64: 4, 128>}]} {
    %c0 = arith.constant 0 : index
    %c0_0 = arith.constant 0 : index
    %0 = vector.load %arg1[%c0, %c0_0] : memref<32x128xf32, #tpu.memory_space<vmem>>, vector<32x128xf32>
    %c0_1 = arith.constant 0 : index
    %c0_2 = arith.constant 0 : index
    %1 = vector.load %arg2[%c0_1, %c0_2] : memref<64x32xf32, #tpu.memory_space<vmem>>, vector<64x32xf32>
    %cst = arith.constant dense<0.000000e+00> : vector<64x128xf32>
    %2 = tpu.matmul %1, %0, %cst {dimension_numbers = #tpu.dot_dimension_numbers<[1], [0], [0], [1], [0, 0, 1, 1], [], []>} : vector<64x32xf32>, vector<32x128xf32>, vector<64x128xf32> -> vector<64x128xf32>
    %c0_3 = arith.constant 0 : index
    %c0_4 = arith.constant 0 : index
    %3 = vector.load %arg3[%c0_3, %c0_4] : memref<64x1xf32, #tpu.memory_space<vmem>>, vector<64x1xf32>
    %4 = vector.broadcast %3 : vector<64x1xf32> to vector<64x128xf32>
    %5 = arith.addf %2, %4 : vector<64x128xf32>
    %cst_5 = arith.constant 0.000000e+00 : f32
    %6 = vector.broadcast %cst_5 : f32 to vector<64x128xf32>
    %7 = arith.maximumf %5, %6 : vector<64x128xf32>
    %c0_6 = arith.constant 0 : index
    %c0_7 = arith.constant 0 : index
    %8 = vector.load %arg4[%c0_6, %c0_7] : memref<16x64xf32, #tpu.memory_space<vmem>>, vector<16x64xf32>
    %cst_8 = arith.constant dense<0.000000e+00> : vector<16x128xf32>
    %9 = tpu.matmul %8, %7, %cst_8 {dimension_numbers = #tpu.dot_dimension_numbers<[1], [0], [0], [1], [0, 0, 1, 1], [], []>} : vector<16x64xf32>, vector<64x128xf32>, vector<16x128xf32> -> vector<16x128xf32>
    %c0_9 = arith.constant 0 : index
    %c0_10 = arith.constant 0 : index
    %10 = vector.load %arg5[%c0_9, %c0_10] : memref<16x1xf32, #tpu.memory_space<vmem>>, vector<16x1xf32>
    %11 = vector.broadcast %10 : vector<16x1xf32> to vector<16x128xf32>
    %12 = arith.addf %9, %11 : vector<16x128xf32>
    %cst_11 = arith.constant 0.000000e+00 : f32
    %13 = vector.broadcast %cst_11 : f32 to vector<16x128xf32>
    %14 = arith.maximumf %12, %13 : vector<16x128xf32>
    %c0_12 = arith.constant 0 : index
    %c0_13 = arith.constant 0 : index
    %15 = vector.load %arg6[%c0_12, %c0_13] : memref<64x128xbf16, #tpu.memory_space<vmem>>, vector<64x128xbf16>
    %16 = arith.extf %15 : vector<64x128xbf16> to vector<64x128xf32>
    %17 = tpu.concatenate %14, %14, %14, %14 in 0 : vector<16x128xf32>, vector<16x128xf32>, vector<16x128xf32>, vector<16x128xf32> -> vector<64x128xf32>
    %c0_14 = arith.constant 0 : index
    %c0_15 = arith.constant 0 : index
    %18 = vector.load %arg7[%c0_14, %c0_15] : memref<4x64xf32, #tpu.memory_space<vmem>>, vector<4x64xf32>
    %19 = arith.mulf %17, %16 : vector<64x128xf32>
    %cst_16 = arith.constant dense<0.000000e+00> : vector<4x128xf32>
    %20 = tpu.matmul %18, %19, %cst_16 {dimension_numbers = #tpu.dot_dimension_numbers<[1], [0], [0], [1], [0, 0, 1, 1], [], []>} : vector<4x64xf32>, vector<64x128xf32>, vector<4x128xf32> -> vector<4x128xf32>
    %21 = arith.mulf %16, %16 : vector<64x128xf32>
    %cst_17 = arith.constant dense<0.000000e+00> : vector<4x128xf32>
    %22 = tpu.matmul %18, %21, %cst_17 {dimension_numbers = #tpu.dot_dimension_numbers<[1], [0], [0], [1], [0, 0, 1, 1], [], []>} : vector<4x64xf32>, vector<64x128xf32>, vector<4x128xf32> -> vector<4x128xf32>
    %23 = arith.mulf %14, %14 : vector<16x128xf32>
    %cst_18 = arith.constant dense<0.000000e+00> : vector<128xf32>
    %24 = vector.multi_reduction <add>, %23, %cst_18 [0] : vector<16x128xf32> to vector<128xf32>
    %25 = vector.shape_cast %24 : vector<128xf32> to vector<1x128xf32>
    %26 = vector.broadcast %25 : vector<1x128xf32> to vector<4x128xf32>
    %27 = arith.mulf %26, %22 : vector<4x128xf32>
    %cst_19 = arith.constant 1.000000e-16 : f32
    %28 = vector.broadcast %cst_19 : f32 to vector<4x128xf32>
    %29 = arith.maximumf %27, %28 : vector<4x128xf32>
    %30 = math.rsqrt %29 : vector<4x128xf32>
    %31 = arith.mulf %20, %30 : vector<4x128xf32>
    %cst_20 = arith.constant 2.000000e+00 : f32
    %32 = vector.broadcast %cst_20 : f32 to vector<4x128xf32>
    %33 = arith.mulf %31, %32 : vector<4x128xf32>
    %c0_21 = arith.constant 0 : index
    %c0_22 = arith.constant 0 : index
    %34 = vector.load %arg8[%c0_21, %c0_22] : memref<4x128xf32, #tpu.memory_space<vmem>>, vector<4x128xf32>
    tpu.vector_store %arg8[%c0_21, %c0_22], %33 {strides = array<i32>} : memref<4x128xf32, #tpu.memory_space<vmem>>, vector<4x128xf32>,
    return
  }
  func.func @transform_0(%arg0: i32) -> (i32, i32) {
    %c0_i32 = arith.constant 0 : i32
    %c0_i32_0 = arith.constant 0 : i32
    return %c0_i32, %arg0 : i32, i32
  }
  func.func @transform_1(%arg0: i32) -> (i32, i32) {
    %c0_i32 = arith.constant 0 : i32
    %c0_i32_0 = arith.constant 0 : i32
    %c0_i32_1 = arith.constant 0 : i32
    return %c0_i32, %c0_i32_0 : i32, i32
  }
  func.func @transform_2(%arg0: i32) -> (i32, i32) {
    %c0_i32 = arith.constant 0 : i32
    %c0_i32_0 = arith.constant 0 : i32
    %c0_i32_1 = arith.constant 0 : i32
    return %c0_i32, %c0_i32_0 : i32, i32
  }
  func.func @transform_3(%arg0: i32) -> (i32, i32) {
    %c0_i32 = arith.constant 0 : i32
    %c0_i32_0 = arith.constant 0 : i32
    %c0_i32_1 = arith.constant 0 : i32
    return %c0_i32, %c0_i32_0 : i32, i32
  }
  func.func @transform_4(%arg0: i32) -> (i32, i32) {
    %c0_i32 = arith.constant 0 : i32
    %c0_i32_0 = arith.constant 0 : i32
    %c0_i32_1 = arith.constant 0 : i32
    return %c0_i32, %c0_i32_0 : i32, i32
  }
  func.func @transform_5(%arg0: i32) -> (i32, i32) {
    %c0_i32 = arith.constant 0 : i32
    %c0_i32_0 = arith.constant 0 : i32
    return %c0_i32, %arg0 : i32, i32
  }
  func.func @transform_6(%arg0: i32) -> (i32, i32) {
    %c0_i32 = arith.constant 0 : i32
    %c0_i32_0 = arith.constant 0 : i32
    %c0_i32_1 = arith.constant 0 : i32
    return %c0_i32, %c0_i32_0 : i32, i32
  }
  func.func @transform_7(%arg0: i32) -> (i32, i32) {
    %c0_i32 = arith.constant 0 : i32
    %c0_i32_0 = arith.constant 0 : i32
    return %c0_i32, %arg0 : i32, i32
  }
}

</mosaic_0001>

<llo_original>
// kernel: tpu_custom_call.1
$region0: #{tpu_custom_call.1}
  #allocation0 [shape = 'u32[]', space=smem, size = 0x4, offset = 0x4, fixed_abs, tag = 'smem constant byte address 0x4 - core index']
  #allocation1 [shape = 'u32[144,128]{1,0:T(1,128)}', space=vmem, size = 0x12000, scoped, tag = 'internal scratch']
  %s0 = inlined_call_operand.vmem [shape: f32[32,256], index: 0, kind: input, shape index: {}]
  %s1 = inlined_call_operand.vmem [shape: f32[64,32], index: 1, kind: input, shape index: {}]
  %s2 = inlined_call_operand.vmem [shape: f32[64,1], index: 2, kind: input, shape index: {}]
  %s3 = inlined_call_operand.vmem [shape: f32[16,64], index: 3, kind: input, shape index: {}]
  %s4 = inlined_call_operand.vmem [shape: f32[16,1], index: 4, kind: input, shape index: {}]
  %s5 = inlined_call_operand.vmem [shape: bf16[64,256], index: 5, kind: input, shape index: {}]
  %s6 = inlined_call_operand.vmem [shape: f32[4,64], index: 6, kind: input, shape index: {}]
  %s7 = inlined_call_operand.hbm [shape: f32[4,256], index: 7, kind: output, shape index: {}]
  %s8 = sld [smem:[#allocation0]]
  $region140: #{tpu_custom_call.1} parent=0
    _
  %s10 = ssub.s32 1, %s8
  %s11 = scalar_select 0, %s10, %s8
  $region1: #{tpu_custom_call.1} parent=0
    #allocation2 [shape = 'u8[32768]{0}', space=vmem, size = 0x8000, scoped, tag = 'input window, operand 0']
    #allocation3 [shape = 'u8[32768]{0}', space=vmem, size = 0x8000, scoped, tag = 'input window, operand 5']
    #allocation4 [shape = 'u8[4096]{0}', space=vmem, size = 0x1000, scoped, tag = 'output window, operand 0']
    #allocation5 [shape = 's32[2]{0}', space=sflag, size = 0x8, scoped, tag = 'scoped memory for tpu_custom_call.1']
    %12 = vsyncpa [#allocation5], 0
    %s13 = scalar_lea.sflag [#allocation5], 1
    %14 = vsyncpa %s13, 0
    loop: start=0, step=1, limit=4
    $region2: #{tpu_custom_call.1} parent=1 // loop_pre_header
      _
    $region3: #{tpu_custom_call.1} parent=1 // loop_header
      %s16 = sphi 0, %s20
      %p17 = scmp.ge.s32.totalorder %s16, 4
      %s26 = sphi 0, %s28
      %s29 = sphi 0, %s26
      %s30 = sphi 0, %s29
      %s46 = sphi 0, %s30
      %s50 = sphi 0, %s50
      %s52 = sphi 0, %s50
      %s53 = sphi 0, %s52
      %s67 = sphi 0, %s53
      %s71 = sphi 0, %s71
      %s73 = sphi 0, %s71
      %s74 = sphi 0, %s73
      %s88 = sphi 0, %s74
      %s92 = sphi 0, %s92
      %s94 = sphi 0, %s92
      %s95 = sphi 0, %s94
      %s109 = sphi 0, %s95
      %s113 = sphi 0, %s113
      %s115 = sphi 0, %s113
      %s116 = sphi 0, %s115
      %s130 = sphi 0, %s116
      %s136 = sphi 0, %s138
      %s139 = sphi 0, %s136
      %s140 = sphi 0, %s139
      %s156 = sphi 0, %s140
      %s160 = sphi 0, %s160
      %s162 = sphi 0, %s160
      %s163 = sphi 0, %s162
      %s177 = sphi 0, %s163
      %s183 = sphi 0, %s185
      %s186 = sphi 0, %s183
      %s187 = sphi 0, %s186
      %s203 = sphi 0, %s187
    $region4: #{tpu_custom_call.1} parent=1 // loop_header_branch
      %19 = sbr.rel (%p17) target = $region8
    $region5: #{tpu_custom_call.1} parent=1 // loop_body
      %s21 = ssub.s32 %s16, 1
      %s22 = ssub.s32 %s16, 2
      %s23 = sadd.s32 %s16, 1
      %s24 = ssub.s32 %s16, %s23
      %p25 = scmp.eq.s32.totalorder %s24, 0
      %s27 = sadd.s32 %s26, 1
      %s28 = scalar_select %p25, %s26, %s27
      %p31 = pneg %p25
      %p32 = scmp.eq.s32.totalorder %s16, 1
      %p33 = por %p31, %p32
      %p34 = scmp.ne.s32.totalorder %s26, %s29
      %p35 = scmp.eq.s32.totalorder %s16, 0
      %p36 = por %p34, %p35
      %p37 = scmp.ne.s32.totalorder %s26, %s29
      %p38 = scmp.eq.s32.totalorder %s21, 1
      %p39 = por %p37, %p38
      %p40 = scmp.ne.s32.totalorder %s29, %s30
      %p41 = scmp.eq.s32.totalorder %s21, 0
      %p42 = por %p40, %p41
      %p43 = scmp.ne.s32.totalorder %s29, %s30
      %p44 = scmp.eq.s32.totalorder %s22, 1
      %p45 = por %p43, %p44
      %p47 = scmp.ne.s32.totalorder %s30, %s46
      %p48 = scmp.eq.s32.totalorder %s22, 0
      %p49 = por %p47, %p48
      %s51 = sadd.s32 %s50, 1
      %p54 = scmp.eq.s32.totalorder %s16, 1
      %p55 = scmp.ne.s32.totalorder %s50, %s52
      %p56 = scmp.eq.s32.totalorder %s16, 0
      %p57 = por %p55, %p56
      %p58 = scmp.ne.s32.totalorder %s50, %s52
      %p59 = scmp.eq.s32.totalorder %s21, 1
      %p60 = por %p58, %p59
      %p61 = scmp.ne.s32.totalorder %s52, %s53
      %p62 = scmp.eq.s32.totalorder %s21, 0
      %p63 = por %p61, %p62
      %p64 = scmp.ne.s32.totalorder %s52, %s53
      %p65 = scmp.eq.s32.totalorder %s22, 1
      %p66 = por %p64, %p65
      %p68 = scmp.ne.s32.totalorder %s53, %s67
      %p69 = scmp.eq.s32.totalorder %s22, 0
      %p70 = por %p68, %p69
      %s72 = sadd.s32 %s71, 1
      %p75 = scmp.eq.s32.totalorder %s16, 1
      %p76 = scmp.ne.s32.totalorder %s71, %s73
      %p77 = scmp.eq.s32.totalorder %s16, 0
      %p78 = por %p76, %p77
      %p79 = scmp.ne.s32.totalorder %s71, %s73
      %p80 = scmp.eq.s32.totalorder %s21, 1
      %p81 = por %p79, %p80
      %p82 = scmp.ne.s32.totalorder %s73, %s74
      %p83 = scmp.eq.s32.totalorder %s21, 0
      %p84 = por %p82, %p83
      %p85 = scmp.ne.s32.totalorder %s73, %s74
      %p86 = scmp.eq.s32.totalorder %s22, 1
      %p87 = por %p85, %p86
      %p89 = scmp.ne.s32.totalorder %s74, %s88
      %p90 = scmp.eq.s32.totalorder %s22, 0
      %p91 = por %p89, %p90
      %s93 = sadd.s32 %s92, 1
      %p96 = scmp.eq.s32.totalorder %s16, 1
      %p97 = scmp.ne.s32.totalorder %s92, %s94
      %p98 = scmp.eq.s32.totalorder %s16, 0
      %p99 = por %p97, %p98
      %p100 = scmp.ne.s32.totalorder %s92, %s94
      %p101 = scmp.eq.s32.totalorder %s21, 1
      %p102 = por %p100, %p101
      %p103 = scmp.ne.s32.totalorder %s94, %s95
      %p104 = scmp.eq.s32.totalorder %s21, 0
      %p105 = por %p103, %p104
      %p106 = scmp.ne.s32.totalorder %s94, %s95
      %p107 = scmp.eq.s32.totalorder %s22, 1
      %p108 = por %p106, %p107
      %p110 = scmp.ne.s32.totalorder %s95, %s109
      %p111 = scmp.eq.s32.totalorder %s22, 0
      %p112 = por %p110, %p111
      %s114 = sadd.s32 %s113, 1
      %p117 = scmp.eq.s32.totalorder %s16, 1
      %p118 = scmp.ne.s32.totalorder %s113, %s115
      %p119 = scmp.eq.s32.totalorder %s16, 0
      %p120 = por %p118, %p119
      %p121 = scmp.ne.s32.totalorder %s113, %s115
      %p122 = scmp.eq.s32.totalorder %s21, 1
      %p123 = por %p121, %p122
      %p124 = scmp.ne.s32.totalorder %s115, %s116
      %p125 = scmp.eq.s32.totalorder %s21, 0
      %p126 = por %p124, %p125
      %p127 = scmp.ne.s32.totalorder %s115, %s116
      %p128 = scmp.eq.s32.totalorder %s22, 1
      %p129 = por %p127, %p128
      %p131 = scmp.ne.s32.totalorder %s116, %s130
      %p132 = scmp.eq.s32.totalorder %s22, 0
      %p133 = por %p131, %p132
      %s134 = ssub.s32 %s16, %s23
      %p135 = scmp.eq.s32.totalorder %s134, 0
      %s137 = sadd.s32 %s136, 1
      %s138 = scalar_select %p135, %s136, %s137
      %p141 = pneg %p135
      %p142 = scmp.eq.s32.totalorder %s16, 1
      %p143 = por %p141, %p142
      %p144 = scmp.ne.s32.totalorder %s136, %s139
      %p145 = scmp.eq.s32.totalorder %s16, 0
      %p146 = por %p144, %p145
      %p147 = scmp.ne.s32.totalorder %s136, %s139
      %p148 = scmp.eq.s32.totalorder %s21, 1
      %p149 = por %p147, %p148
      %p150 = scmp.ne.s32.totalorder %s139, %s140
      %p151 = scmp.eq.s32.totalorder %s21, 0
      %p152 = por %p150, %p151
      %p153 = scmp.ne.s32.totalorder %s139, %s140
      %p154 = scmp.eq.s32.totalorder %s22, 1
      %p155 = por %p153, %p154
      %p157 = scmp.ne.s32.totalorder %s140, %s156
      %p158 = scmp.eq.s32.totalorder %s22, 0
      %p159 = por %p157, %p158
      %s161 = sadd.s32 %s160, 1
      %p164 = scmp.eq.s32.totalorder %s16, 1
      %p165 = scmp.ne.s32.totalorder %s160, %s162
      %p166 = scmp.eq.s32.totalorder %s16, 0
      %p167 = por %p165, %p166
      %p168 = scmp.ne.s32.totalorder %s160, %s162
      %p169 = scmp.eq.s32.totalorder %s21, 1
      %p170 = por %p168, %p169
      %p171 = scmp.ne.s32.totalorder %s162, %s163
      %p172 = scmp.eq.s32.totalorder %s21, 0
      %p173 = por %p171, %p172
      %p174 = scmp.ne.s32.totalorder %s162, %s163
      %p175 = scmp.eq.s32.totalorder %s22, 1
      %p176 = por %p174, %p175
      %p178 = scmp.ne.s32.totalorder %s163, %s177
      %p179 = scmp.eq.s32.totalorder %s22, 0
      %p180 = por %p178, %p179
      %s181 = ssub.s32 %s16, %s23
      %p182 = scmp.eq.s32.totalorder %s181, 0
      %s184 = sadd.s32 %s183, 1
      %s185 = scalar_select %p182, %s183, %s184
      %p188 = pneg %p182
      %p189 = scmp.eq.s32.totalorder %s16, 1
      %p190 = por %p188, %p189
      %p191 = scmp.ne.s32.totalorder %s183, %s186
      %p192 = scmp.eq.s32.totalorder %s16, 0
      %p193 = por %p191, %p192
      %p194 = scmp.ne.s32.totalorder %s183, %s186
      %p195 = scmp.eq.s32.totalorder %s21, 1
      %p196 = por %p194, %p195
      %p197 = scmp.ne.s32.totalorder %s186, %s187
      %p198 = scmp.eq.s32.totalorder %s21, 0
      %p199 = por %p197, %p198
      %p200 = scmp.ne.s32.totalorder %s186, %s187
      %p201 = scmp.eq.s32.totalorder %s22, 1
      %p202 = por %p200, %p201
      %p204 = scmp.ne.s32.totalorder %s187, %s203
      %p205 = scmp.eq.s32.totalorder %s22, 0
      %p206 = por %p204, %p205
      %p207 = scmp.le.s32.totalorder 1, %s16
      %p208 = scmp.lt.s32.totalorder %s16, 3
      %p209 = pnand %p207, %p208
      %p210 = pneg %p209
      // Predicated region
      $region9: #{tpu_custom_call.1} parent=5 // pred_check
        _
      $region10: #{tpu_custom_call.1} parent=5 // pred_check_branch
        %212 = sbr.rel (%p209) target = $region12
      $region11: #{tpu_custom_call.1} parent=5 // pred_region
        %s213 = ssub.s32 %s16, 1
        // Predicated region
        $region13: #{tpu_custom_call.1} parent=11 // pred_check
          %p214 = pneg %p63
        $region14: #{tpu_custom_call.1} parent=11 // pred_check_branch
          %216 = sbr.rel (%p214) target = $region16
        $region15: #{tpu_custom_call.1} parent=11 // pred_region
          _
        $region16: #{tpu_custom_call.1} parent=11 // pred_fallthru
          _
        // Predicated region
        $region17: #{tpu_custom_call.1} parent=11 // pred_check
          %p217 = pneg %p84
        $region18: #{tpu_custom_call.1} parent=11 // pred_check_branch
          %219 = sbr.rel (%p217) target = $region20
        $region19: #{tpu_custom_call.1} parent=11 // pred_region
          _
        $region20: #{tpu_custom_call.1} parent=11 // pred_fallthru
          _
        // Predicated region
        $region21: #{tpu_custom_call.1} parent=11 // pred_check
          %p220 = pneg %p105
        $region22: #{tpu_custom_call.1} parent=11 // pred_check_branch
          %222 = sbr.rel (%p220) target = $region24
        $region23: #{tpu_custom_call.1} parent=11 // pred_region
          _
        $region24: #{tpu_custom_call.1} parent=11 // pred_fallthru
          _
        // Predicated region
        $region25: #{tpu_custom_call.1} parent=11 // pred_check
          %p223 = pneg %p126
        $region26: #{tpu_custom_call.1} parent=11 // pred_check_branch
          %225 = sbr.rel (%p223) target = $region28
        $region27: #{tpu_custom_call.1} parent=11 // pred_region
          _
        $region28: #{tpu_custom_call.1} parent=11 // pred_fallthru
          _
        // Predicated region
        $region29: #{tpu_custom_call.1} parent=11 // pred_check
          %p226 = pneg %p173
        $region30: #{tpu_custom_call.1} parent=11 // pred_check_branch
          %228 = sbr.rel (%p226) target = $region32
        $region31: #{tpu_custom_call.1} parent=11 // pred_region
          _
        $region32: #{tpu_custom_call.1} parent=11 // pred_fallthru
          _
      $region12: #{tpu_custom_call.1} parent=5 // pred_fallthru
        _
      %p229 = scmp.lt.s32.totalorder %s16, 2
      // Predicated region
      $region33: #{tpu_custom_call.1} parent=5 // pred_check
        %p230 = pneg %p229
      $region34: #{tpu_custom_call.1} parent=5 // pred_check_branch
        %232 = sbr.rel (%p230) target = $region36
      $region35: #{tpu_custom_call.1} parent=5 // pred_region
        // Predicated region
        $region37: #{tpu_custom_call.1} parent=35 // pred_check
          %p233 = pneg %p36
        $region38: #{tpu_custom_call.1} parent=35 // pred_check_branch
          %235 = sbr.rel (%p233) target = $region40
        $region39: #{tpu_custom_call.1} parent=35 // pred_region
          %s236 = sand.u32 %s26, 1
          %s237 = sand.u32 %s26, 1
          %s238 = smul.addr %s237, 32
          %s239 = scalar_lea.vmem [#allocation2], %s238
          %s240 = smul.addr %s16, 8
          %s241 = scalar_lea.vmem %s0, %s240
          // Predicated region
          $region41: #{tpu_custom_call.1} parent=39 // pred_check
            _
          $region42: #{tpu_custom_call.1} parent=39 // pred_check_branch
            %243 = sbr.rel (0) target = $region44
          $region43: #{tpu_custom_call.1} parent=39 // pred_region
            // Predicated region
            $region45: #{tpu_custom_call.1} parent=43 // pred_check
              _
            $region46: #{tpu_custom_call.1} parent=43 // pred_check_branch
              %245 = sbr.rel (0) target = $region48
            $region47: #{tpu_custom_call.1} parent=43 // pred_region
              // Predicated region
              $region60: #{tpu_custom_call.1} parent=47 // pred_check
                _
              $region61: #{tpu_custom_call.1} parent=47 // pred_check_branch
                %267 = sbr.rel (0) target = $region63
              $region62: #{tpu_custom_call.1} parent=47 // pred_region
                loop: start=0, step=1, limit=1
                $region64: #{tpu_custom_call.1} parent=62 // loop_pre_header
                  _
                $region65: #{tpu_custom_call.1} parent=62 // loop_header
                  %s269 = sphi 0, %s273
                  %p270 = scmp.ge.s32.totalorder %s269, 1
                  %s274 = sphi %s241, %s241
                  %s275 = sphi %s239, %s239
                $region66: #{tpu_custom_call.1} parent=62 // loop_header_branch
                  %272 = sbr.rel (%p270) target = $region70
                $region67: #{tpu_custom_call.1} parent=62 // loop_body
                  %v276 = vld [vmem:[%s274] sm:$0xff]
                  %277 = vst [vmem:[%s275] sm:$0xff] %v276
                  %v278 = vld [vmem:[%s274 + $0x10] sm:$0xff]
                  %279 = vst [vmem:[%s275 + $0x8] sm:$0xff] %v278
                  %v280 = vld [vmem:[%s274 + $0x20] sm:$0xff]
                  %281 = vst [vmem:[%s275 + $0x10] sm:$0xff] %v280
                  %v282 = vld [vmem:[%s274 + $0x30] sm:$0xff]
                  %283 = vst [vmem:[%s275 + $0x18] sm:$0xff] %v282
                $region68: #{tpu_custom_call.1} parent=62 // loop_footer
                  %s273 = sadd.s32 1, %s269
                $region69: #{tpu_custom_call.1} parent=62 // loop_footer_branch
                  %268 = sbr.rel target = $region65
                $region70: #{tpu_custom_call.1} parent=62 // loop_exit
                  _
              $region63: #{tpu_custom_call.1} parent=47 // pred_fallthru
                _
              // Predicated region
              $region71: #{tpu_custom_call.1} parent=47 // pred_check
                _
              $region72: #{tpu_custom_call.1} parent=47 // pred_check_branch
                %285 = sbr.rel target = $region74
              $region73: #{tpu_custom_call.1} parent=47 // pred_region
                _
              $region74: #{tpu_custom_call.1} parent=47 // pred_fallthru
                _
            $region48: #{tpu_custom_call.1} parent=43 // pred_fallthru
              _
            // Predicated region
            $region49: #{tpu_custom_call.1} parent=43 // pred_check
              _
            $region50: #{tpu_custom_call.1} parent=43 // pred_check_branch
              %247 = sbr.rel target = $region52
            $region51: #{tpu_custom_call.1} parent=43 // pred_region
              %s249 = ssub.s32 256, 1
              loop: start=0, step=1, limit=1
              $region53: #{tpu_custom_call.1} parent=51 // loop_pre_header
                _
              $region54: #{tpu_custom_call.1} parent=51 // loop_header
                %s251 = sphi 0, %s255
                %p252 = scmp.ge.s32.totalorder %s251, 1
                %s256 = sphi %s241, %s241
                %s257 = sphi %s239, %s239
              $region55: #{tpu_custom_call.1} parent=51 // loop_header_branch
                %254 = sbr.rel (%p252) target = $region59
              $region56: #{tpu_custom_call.1} parent=51 // loop_body
                %v258 = vld [vmem:[%s256] sm:%s249]
                %259 = vst [vmem:[%s257] sm:%s249] %v258
                %v260 = vld [vmem:[%s256 + $0x10] sm:%s249]
                %261 = vst [vmem:[%s257 + $0x8] sm:%s249] %v260
                %v262 = vld [vmem:[%s256 + $0x20] sm:%s249]
                %263 = vst [vmem:[%s257 + $0x10] sm:%s249] %v262
                %v264 = vld [vmem:[%s256 + $0x30] sm:%s249]
                %265 = vst [vmem:[%s257 + $0x18] sm:%s249] %v264
              $region57: #{tpu_custom_call.1} parent=51 // loop_footer
                %s255 = sadd.s32 1, %s251
              $region58: #{tpu_custom_call.1} parent=51 // loop_footer_branch
                %250 = sbr.rel target = $region54
              $region59: #{tpu_custom_call.1} parent=51 // loop_exit
                _
            $region52: #{tpu_custom_call.1} parent=43 // pred_fallthru
              _
          $region44: #{tpu_custom_call.1} parent=39 // pred_fallthru
            _
          %286 = vnop
        $region40: #{tpu_custom_call.1} parent=35 // pred_fallthru
          _
        // Predicated region
        $region75: #{tpu_custom_call.1} parent=35 // pred_check
          %p287 = pneg %p146
        $region76: #{tpu_custom_call.1} parent=35 // pred_check_branch
          %289 = sbr.rel (%p287) target = $region78
        $region77: #{tpu_custom_call.1} parent=35 // pred_region
          %s290 = sand.u32 %s136, 1
          %s291 = sand.u32 %s136, 1
          %s292 = smul.addr %s291, 32
          %s293 = scalar_lea.vmem [#allocation3], %s292
          %s294 = smul.addr %s16, 4
          %s295 = scalar_lea.vmem %s5, %s294
          // Predicated region
          $region79: #{tpu_custom_call.1} parent=77 // pred_check
            _
          $region80: #{tpu_custom_call.1} parent=77 // pred_check_branch
            %297 = sbr.rel (0) target = $region82
          $region81: #{tpu_custom_call.1} parent=77 // pred_region
            // Predicated region
            $region83: #{tpu_custom_call.1} parent=81 // pred_check
              _
            $region84: #{tpu_custom_call.1} parent=81 // pred_check_branch
              %299 = sbr.rel target = $region86
            $region85: #{tpu_custom_call.1} parent=81 // pred_region
              // Predicated region
              $region98: #{tpu_custom_call.1} parent=85 // pred_check
                _
              $region99: #{tpu_custom_call.1} parent=85 // pred_check_branch
                %329 = sbr.rel (0) target = $region101
              $region100: #{tpu_custom_call.1} parent=85 // pred_region
                loop: start=0, step=1, limit=1
                $region102: #{tpu_custom_call.1} parent=100 // loop_pre_header
                  _
                $region103: #{tpu_custom_call.1} parent=100 // loop_header
                  %s331 = sphi 0, %s335
                  %p332 = scmp.ge.s32.totalorder %s331, 1
                  %s336 = sphi %s295, %s295
                  %s337 = sphi %s293, %s293
                $region104: #{tpu_custom_call.1} parent=100 // loop_header_branch
                  %334 = sbr.rel (%p332) target = $region108
                $region105: #{tpu_custom_call.1} parent=100 // loop_body
                  _
                $region106: #{tpu_custom_call.1} parent=100 // loop_footer
                  %s335 = sadd.s32 1, %s331
                $region107: #{tpu_custom_call.1} parent=100 // loop_footer_branch
                  %330 = sbr.rel target = $region103
                $region108: #{tpu_custom_call.1} parent=100 // loop_exit
                  _
                %s339 = ssub.s32 16, 1
                loop: start=0, step=1, limit=1
                $region109: #{tpu_custom_call.1} parent=100 // loop_pre_header
                  _
                $region110: #{tpu_custom_call.1} parent=100 // loop_header
                  %s341 = sphi 0, %s345
                  %p342 = scmp.ge.s32.totalorder %s341, 1
                  %s346 = sphi %s295, %s295
                  %s347 = sphi %s293, %s293
                $region111: #{tpu_custom_call.1} parent=100 // loop_header_branch
                  %344 = sbr.rel (%p342) target = $region115
                $region112: #{tpu_custom_call.1} parent=100 // loop_body
                  %v348 = vld [vmem:[%s346] sm:%s339]
                  %349 = vst [vmem:[%s347] sm:%s339] %v348
                  %v350 = vld [vmem:[%s346 + $0x8] sm:%s339]
                  %351 = vst [vmem:[%s347 + $0x4] sm:%s339] %v350
                  %v352 = vld [vmem:[%s346 + $0x10] sm:%s339]
                  %353 = vst [vmem:[%s347 + $0x8] sm:%s339] %v352
                  %v354 = vld [vmem:[%s346 + $0x18] sm:%s339]
                  %355 = vst [vmem:[%s347 + $0xc] sm:%s339] %v354
                  %v356 = vld [vmem:[%s346 + $0x20] sm:%s339]
                  %357 = vst [vmem:[%s347 + $0x10] sm:%s339] %v356
                  %v358 = vld [vmem:[%s346 + $0x28] sm:%s339]
                  %359 = vst [vmem:[%s347 + $0x14] sm:%s339] %v358
                  %v360 = vld [vmem:[%s346 + $0x30] sm:%s339]
                  %361 = vst [vmem:[%s347 + $0x18] sm:%s339] %v360
                  %v362 = vld [vmem:[%s346 + $0x38] sm:%s339]
                  %363 = vst [vmem:[%s347 + $0x1c] sm:%s339] %v362
                $region113: #{tpu_custom_call.1} parent=100 // loop_footer
                  %s345 = sadd.s32 1, %s341
                $region114: #{tpu_custom_call.1} parent=100 // loop_footer_branch
                  %340 = sbr.rel target = $region110
                $region115: #{tpu_custom_call.1} parent=100 // loop_exit
                  _
              $region101: #{tpu_custom_call.1} parent=85 // pred_fallthru
                _
            $region86: #{tpu_custom_call.1} parent=81 // pred_fallthru
              _
            // Predicated region
            $region87: #{tpu_custom_call.1} parent=81 // pred_check
              _
            $region88: #{tpu_custom_call.1} parent=81 // pred_check_branch
              %301 = sbr.rel (0) target = $region90
            $region89: #{tpu_custom_call.1} parent=81 // pred_region
              %s303 = ssub.s32 16, 1
              loop: start=0, step=1, limit=1
              $region91: #{tpu_custom_call.1} parent=89 // loop_pre_header
                _
              $region92: #{tpu_custom_call.1} parent=89 // loop_header
                %s305 = sphi 0, %s309
                %p306 = scmp.ge.s32.totalorder %s305, 1
                %s310 = sphi %s295, %s295
                %s311 = sphi %s293, %s293
              $region93: #{tpu_custom_call.1} parent=89 // loop_header_branch
                %308 = sbr.rel (%p306) target = $region97
              $region94: #{tpu_custom_call.1} parent=89 // loop_body
                %v312 = vld [vmem:[%s310] sm:%s303]
                %313 = vst [vmem:[%s311] sm:%s303] %v312
                %v314 = vld [vmem:[%s310 + $0x8] sm:%s303]
                %315 = vst [vmem:[%s311 + $0x4] sm:%s303] %v314
                %v316 = vld [vmem:[%s310 + $0x10] sm:%s303]
                %317 = vst [vmem:[%s311 + $0x8] sm:%s303] %v316
                %v318 = vld [vmem:[%s310 + $0x18] sm:%s303]
                %319 = vst [vmem:[%s311 + $0xc] sm:%s303] %v318
                %v320 = vld [vmem:[%s310 + $0x20] sm:%s303]
                %321 = vst [vmem:[%s311 + $0x10] sm:%s303] %v320
                %v322 = vld [vmem:[%s310 + $0x28] sm:%s303]
                %323 = vst [vmem:[%s311 + $0x14] sm:%s303] %v322
                %v324 = vld [vmem:[%s310 + $0x30] sm:%s303]
                %325 = vst [vmem:[%s311 + $0x18] sm:%s303] %v324
                %v326 = vld [vmem:[%s310 + $0x38] sm:%s303]
                %327 = vst [vmem:[%s311 + $0x1c] sm:%s303] %v326
              $region95: #{tpu_custom_call.1} parent=89 // loop_footer
                %s309 = sadd.s32 1, %s305
              $region96: #{tpu_custom_call.1} parent=89 // loop_footer_branch
                %304 = sbr.rel target = $region92
              $region97: #{tpu_custom_call.1} parent=89 // loop_exit
                _
            $region90: #{tpu_custom_call.1} parent=81 // pred_fallthru
              _
          $region82: #{tpu_custom_call.1} parent=77 // pred_fallthru
            _
          %364 = vnop
        $region78: #{tpu_custom_call.1} parent=35 // pred_fallthru
          _
      $region36: #{tpu_custom_call.1} parent=5 // pred_fallthru
        _
      %p365 = scmp.le.s32.totalorder 1, %s16
      %p366 = scmp.lt.s32.totalorder %s16, 3
      %p367 = pnand %p365, %p366
      %p368 = pneg %p367
      // Predicated region
      $region116: #{tpu_custom_call.1} parent=5 // pred_check
        _
      $region117: #{tpu_custom_call.1} parent=5 // pred_check_branch
        %370 = sbr.rel (%p367) target = $region119
      $region118: #{tpu_custom_call.1} parent=5 // pred_region
        %s371 = ssub.s32 %s16, 1
        %s372 = sand.u32 %s29, 1
        %s373 = sand.u32 %s29, 1
        %s374 = smul.addr %s373, 32
        %s375 = scalar_lea.vmem [#allocation2], %s374
        // Predicated region
        $region120: #{tpu_custom_call.1} parent=118 // pred_check
          %p376 = pneg %p42
        $region121: #{tpu_custom_call.1} parent=118 // pred_check_branch
          %378 = sbr.rel (%p376) target = $region123
        $region122: #{tpu_custom_call.1} parent=118 // pred_region
          _
        $region123: #{tpu_custom_call.1} parent=118 // pred_fallthru
          _
        %s379 = sand.u32 %s139, 1
        %s380 = sand.u32 %s139, 1
        %s381 = smul.addr %s380, 32
        %s382 = scalar_lea.vmem [#allocation3], %s381
        // Predicated region
        $region124: #{tpu_custom_call.1} parent=118 // pred_check
          %p383 = pneg %p152
        $region125: #{tpu_custom_call.1} parent=118 // pred_check_branch
          %385 = sbr.rel (%p383) target = $region127
        $region126: #{tpu_custom_call.1} parent=118 // pred_region
          _
        $region127: #{tpu_custom_call.1} parent=118 // pred_fallthru
          _
        %s386 = sand.u32 %s29, 1
        %s387 = sand.u32 %s29, 1
        %s388 = smul.addr %s387, 32
        %s389 = scalar_lea.vmem [#allocation2], %s388
        %p390 = pneg %p42
        %p391 = pneg %p39
        %p392 = pneg %p63
        %p393 = pneg %p60
        %p394 = pneg %p84
        %p395 = pneg %p81
        %p396 = pneg %p105
        %p397 = pneg %p102
        %p398 = pneg %p126
        %p399 = pneg %p123
        %s400 = sand.u32 %s139, 1
        %s401 = sand.u32 %s139, 1
        %s402 = smul.addr %s401, 32
        %s403 = scalar_lea.vmem [#allocation3], %s402
        %p404 = pneg %p152
        %p405 = pneg %p149
        %p406 = pneg %p173
        %p407 = pneg %p170
        %p408 = pneg %p199
        %p409 = pneg %p196
        %s410 = sand.u32 %s186, 1
        %s411 = scalar_lea.sflag [#allocation5], %s410
        %s412 = sand.u32 %s186, 1
        %s413 = smul.addr %s412, 4
        %s414 = scalar_lea.vmem [#allocation4], %s413
        %v415 = vld [vmem:[%s375] sm:$0xff]
        %v416 = vld [vmem:[%s375 + $0x8] sm:$0xff]
        %v417 = vld [vmem:[%s375 + $0x10] sm:$0xff]
        %v418 = vld [vmem:[%s375 + $0x18] sm:$0xff]
        %v419 = vld [vmem:[%s1] sm:$0xff]
        %v420 = vld [vmem:[%s1 + $0x8] sm:$0xff]
        %v421 = vld [vmem:[%s1 + $0x10] sm:$0xff]
        %v422 = vld [vmem:[%s1 + $0x18] sm:$0xff]
        %v423 = vld [vmem:[%s1 + $0x20] sm:$0xff]
        %v424 = vld [vmem:[%s1 + $0x28] sm:$0xff]
        %v425 = vld [vmem:[%s1 + $0x30] sm:$0xff]
        %v426 = vld [vmem:[%s1 + $0x38] sm:$0xff]
        %v427 = vld [vmem:[%s2] sm:$0xff]
        %v428 = vld [vmem:[%s2 + $0x8] sm:$0xff]
        %v429 = vld [vmem:[%s2 + $0x10] sm:$0xff]
        %v430 = vld [vmem:[%s2 + $0x18] sm:$0xff]
        %v431 = vld [vmem:[%s2 + $0x20] sm:$0xff]
        %v432 = vld [vmem:[%s2 + $0x28] sm:$0xff]
        %v433 = vld [vmem:[%s2 + $0x30] sm:$0xff]
        %v434 = vld [vmem:[%s2 + $0x38] sm:$0xff]
        %436 = vset.pattern.permute.xlu0 0
        %437 = vperm.xlu0 %436, %v427
        %v438 = vpop.permute.xlu0 %437
        %441 = vset.pattern.permute.xlu0 0
        %442 = vperm.xlu0 %441, %v428
        %v443 = vpop.permute.xlu0 %442
        %446 = vset.pattern.permute.xlu0 0
        %447 = vperm.xlu0 %446, %v429
        %v448 = vpop.permute.xlu0 %447
        %451 = vset.pattern.permute.xlu0 0
        %452 = vperm.xlu0 %451, %v430
        %v453 = vpop.permute.xlu0 %452
        %456 = vset.pattern.permute.xlu0 0
        %457 = vperm.xlu0 %456, %v431
        %v458 = vpop.permute.xlu0 %457
        %461 = vset.pattern.permute.xlu0 0
        %462 = vperm.xlu0 %461, %v432
        %v463 = vpop.permute.xlu0 %462
        %466 = vset.pattern.permute.xlu0 0
        %467 = vperm.xlu0 %466, %v433
        %v468 = vpop.permute.xlu0 %467
        %471 = vset.pattern.permute.xlu0 0
        %472 = vperm.xlu0 %471, %v434
        %v473 = vpop.permute.xlu0 %472
        %vm475 = vcmask 261120
        %v477 = vsel %vm475, %v419, 0
        %v480 = vsel %vm475, %v420, 0
        %v483 = vsel %vm475, %v421, 0
        %v486 = vsel %vm475, %v422, 0
        %v489 = vsel %vm475, %v423, 0
        %v492 = vsel %vm475, %v424, 0
        %v495 = vsel %vm475, %v425, 0
        %v498 = vsel %vm475, %v426, 0
        %500 = vmatprep.subr.mxu0 0.0
        %501 = vmatpush1.msra.mxu0 0.0
        %502 = vmatprep.subr.mxu0 0.0
        %503 = vmatpush1.msra.mxu0 0.0
        %504 = vmatprep.subr.mxu0 0.0
        %505 = vmatpush1.msra.mxu0 0.0
        %506 = vmatprep.subr.mxu0 0.0
        %507 = vmatpush1.msra.mxu0 0.0
        %508 = vmatprep.subr.mxu0 0.0
        %509 = vmatpush1.msra.mxu0 0.0
        %510 = vmatprep.subr.mxu0 0.0
        %511 = vmatpush1.msra.mxu0 0.0
        %512 = vmatprep.subr.mxu0 0.0
        %513 = vmatpush1.msra.mxu0 0.0
        %514 = vmatprep.subr.mxu0 0.0
        %515 = vmatpush1.msra.mxu0 0.0
        %516 = vmatprep.subr.mxu0 0.0
        %517 = vmatpush1.msra.mxu0 0.0
        %518 = vmatprep.subr.mxu0 0.0
        %519 = vmatpush1.msra.mxu0 0.0
        %520 = vmatprep.subr.mxu0 0.0
        %521 = vmatpush1.msra.mxu0 0.0
        %522 = vmatprep.subr.mxu0 0.0
        %523 = vmatpush1.msra.mxu0 0.0
        %524 = vmatprep.subr.mxu0 0.0
        %525 = vmatpush1.msra.mxu0 %v418
        %526 = vmatprep.subr.mxu0 0.0
        %527 = vmatpush1.msra.mxu0 %v417
        %528 = vmatprep.subr.mxu0 0.0
        %529 = vmatpush1.msra.mxu0 %v416
        %530 = vmatprep.subr.mxu0 0.0
        %531 = vmatpush1.msra.mxu0 %v415
        %532 = vmatprep.subr.mxu0 0.0
        %533 = vmatpush2.msra.mxu0 0.0
        %534 = vmatprep.subr.mxu0 0.0
        %535 = vmatpush2.msra.mxu0 0.0
        %536 = vmatprep.subr.mxu0 0.0
        %537 = vmatpush2.msra.mxu0 0.0
        %538 = vmatprep.subr.mxu0 0.0
        %539 = vmatpush2.msra.mxu0 0.0
        %540 = vmatprep.subr.mxu0 0.0
        %541 = vmatpush2.msra.mxu0 0.0
        %542 = vmatprep.subr.mxu0 0.0
        %543 = vmatpush2.msra.mxu0 0.0
        %544 = vmatprep.subr.mxu0 0.0
        %545 = vmatpush2.msra.mxu0 0.0
        %546 = vmatprep.subr.mxu0 0.0
        %547 = vmatpush2.msra.mxu0 0.0
        %548 = vmatprep.subr.mxu0 0.0
        %549 = vmatpush2.msra.mxu0 0.0
        %550 = vmatprep.subr.mxu0 0.0
        %551 = vmatpush2.msra.mxu0 0.0
        %552 = vmatprep.subr.mxu0 0.0
        %553 = vmatpush2.msra.mxu0 0.0
        %554 = vmatprep.subr.mxu0 0.0
        %555 = vmatpush2.msra.mxu0 0.0
        %556 = vmatprep.subr.mxu0 0.0
        %557 = vmatpush2.msra.mxu0 0.0
        %558 = vmatprep.subr.mxu0 0.0
        %559 = vmatpush2.msra.mxu0 0.0
        %560 = vmatprep.subr.mxu0 0.0
        %561 = vmatpush2.msra.mxu0 0.0
        %562 = vmatprep.subr.mxu0 0.0
        %563 = vmatpush2.msra.mxu0 0.0
        %564 = vmatprep.mubr.f32.mxu0 0.0
        %565 = vmatmul.mubr.f32.gmra.mxu0 %v477
        %v566 = vpop.f32.mrf.mxu0
        %v567 = vadd.f32 %v438, %v566
        %v568 = vpop.f32.mrf.mxu0
        %569 = vmatprep.mubr.f32.mxu0 0.0
        %570 = vmatmul.mubr.f32.gmra.mxu0 %v480
        %v571 = vpop.f32.mrf.mxu0
        %v572 = vadd.f32 %v443, %v571
        %v573 = vpop.f32.mrf.mxu0
        %574 = vmatprep.mubr.f32.mxu0 0.0
        %575 = vmatmul.mubr.f32.gmra.mxu0 %v483
        %v576 = vpop.f32.mrf.mxu0
        %v577 = vadd.f32 %v448, %v576
        %v578 = vpop.f32.mrf.mxu0
        %579 = vmatprep.mubr.f32.mxu0 0.0
        %580 = vmatmul.mubr.f32.gmra.mxu0 %v486
        %v581 = vpop.f32.mrf.mxu0
        %v582 = vadd.f32 %v453, %v581
        %v583 = vpop.f32.mrf.mxu0
        %584 = vmatprep.mubr.f32.mxu0 0.0
        %585 = vmatmul.mubr.f32.gmra.mxu0 %v489
        %v586 = vpop.f32.mrf.mxu0
        %v587 = vadd.f32 %v458, %v586
        %v588 = vpop.f32.mrf.mxu0
        %589 = vmatprep.mubr.f32.mxu0 0.0
        %590 = vmatmul.mubr.f32.gmra.mxu0 %v492
        %v591 = vpop.f32.mrf.mxu0
        %v592 = vadd.f32 %v463, %v591
        %v593 = vpop.f32.mrf.mxu0
        %594 = vmatprep.mubr.f32.mxu0 0.0
        %595 = vmatmul.mubr.f32.gmra.mxu0 %v495
        %v596 = vpop.f32.mrf.mxu0
        %v597 = vadd.f32 %v468, %v596
        %v598 = vpop.f32.mrf.mxu0
        %599 = vmatprep.mubr.f32.mxu0 0.0
        %600 = vmatmul.mubr.f32.gmra.mxu0 %v498
        %v601 = vpop.f32.mrf.mxu0
        %v602 = vadd.f32 %v473, %v601
        %v603 = vpop.f32.mrf.mxu0
        %604 = vdwg.mxu0
        %v605 = vmax.f32 %v567, 0.0
        %v606 = vmax.f32 %v572, 0.0
        %v607 = vmax.f32 %v577, 0.0
        %v608 = vmax.f32 %v582, 0.0
        %v609 = vmax.f32 %v587, 0.0
        %v610 = vmax.f32 %v592, 0.0
        %v611 = vmax.f32 %v597, 0.0
        %v612 = vmax.f32 %v602, 0.0
        %v613 = vld [vmem:[%s3] sm:$0xff]
        %v614 = vld [vmem:[%s3 + $0x8] sm:$0xff]
        %v615 = vld [vmem:[%s4] sm:$0xff]
        %v616 = vld [vmem:[%s4 + $0x8] sm:$0xff]
        %618 = vset.pattern.permute.xlu0 0
        %619 = vperm.xlu0 %618, %v615
        %v620 = vpop.permute.xlu0 %619
        %623 = vset.pattern.permute.xlu0 0
        %624 = vperm.xlu0 %623, %v616
        %v625 = vpop.permute.xlu0 %624
        %vm627 = vcmask 523264
        %v629 = vsel %vm627, %v613, 0
        %v632 = vsel %vm627, %v614, 0
        %634 = vmatprep.subr.mxu0 0.0
        %635 = vmatpush1.msra.mxu0 0.0
        %636 = vmatprep.subr.mxu0 0.0
        %637 = vmatpush1.msra.mxu0 0.0
        %638 = vmatprep.subr.mxu0 0.0
        %639 = vmatpush1.msra.mxu0 0.0
        %640 = vmatprep.subr.mxu0 0.0
        %641 = vmatpush1.msra.mxu0 0.0
        %642 = vmatprep.subr.mxu0 0.0
        %643 = vmatpush1.msra.mxu0 0.0
        %644 = vmatprep.subr.mxu0 0.0
        %645 = vmatpush1.msra.mxu0 0.0
        %646 = vmatprep.subr.mxu0 0.0
        %647 = vmatpush1.msra.mxu0 0.0
        %648 = vmatprep.subr.mxu0 0.0
        %649 = vmatpush1.msra.mxu0 0.0
        %650 = vmatprep.subr.mxu0 0.0
        %651 = vmatpush1.msra.mxu0 %v612
        %652 = vmatprep.subr.mxu0 0.0
        %653 = vmatpush1.msra.mxu0 %v611
        %654 = vmatprep.subr.mxu0 0.0
        %655 = vmatpush1.msra.mxu0 %v610
        %656 = vmatprep.subr.mxu0 0.0
        %657 = vmatpush1.msra.mxu0 %v609
        %658 = vmatprep.subr.mxu0 0.0
        %659 = vmatpush1.msra.mxu0 %v608
        %660 = vmatprep.subr.mxu0 0.0
        %661 = vmatpush1.msra.mxu0 %v607
        %662 = vmatprep.subr.mxu0 0.0
        %663 = vmatpush1.msra.mxu0 %v606
        %664 = vmatprep.subr.mxu0 0.0
        %665 = vmatpush1.msra.mxu0 %v605
        %666 = vmatprep.subr.mxu0 0.0
        %667 = vmatpush2.msra.mxu0 0.0
        %668 = vmatprep.subr.mxu0 0.0
        %669 = vmatpush2.msra.mxu0 0.0
        %670 = vmatprep.subr.mxu0 0.0
        %671 = vmatpush2.msra.mxu0 0.0
        %672 = vmatprep.subr.mxu0 0.0
        %673 = vmatpush2.msra.mxu0 0.0
        %674 = vmatprep.subr.mxu0 0.0
        %675 = vmatpush2.msra.mxu0 0.0
        %676 = vmatprep.subr.mxu0 0.0
        %677 = vmatpush2.msra.mxu0 0.0
        %678 = vmatprep.subr.mxu0 0.0
        %679 = vmatpush2.msra.mxu0 0.0
        %680 = vmatprep.subr.mxu0 0.0
        %681 = vmatpush2.msra.mxu0 0.0
        %682 = vmatprep.subr.mxu0 0.0
        %683 = vmatpush2.msra.mxu0 0.0
        %684 = vmatprep.subr.mxu0 0.0
        %685 = vmatpush2.msra.mxu0 0.0
        %686 = vmatprep.subr.mxu0 0.0
        %687 = vmatpush2.msra.mxu0 0.0
        %688 = vmatprep.subr.mxu0 0.0
        %689 = vmatpush2.msra.mxu0 0.0
        %690 = vmatprep.subr.mxu0 0.0
        %691 = vmatpush2.msra.mxu0 0.0
        %692 = vmatprep.subr.mxu0 0.0
        %693 = vmatpush2.msra.mxu0 0.0
        %694 = vmatprep.subr.mxu0 0.0
        %695 = vmatpush2.msra.mxu0 0.0
        %696 = vmatprep.subr.mxu0 0.0
        %697 = vmatpush2.msra.mxu0 0.0
        %698 = vmatprep.mubr.f32.mxu0 0.0
        %699 = vmatmul.mubr.f32.gmra.mxu0 %v629
        %v700 = vpop.f32.mrf.mxu0
        %v701 = vadd.f32 %v620, %v700
        %v702 = vpop.f32.mrf.mxu0
        %703 = vmatprep.mubr.f32.mxu0 0.0
        %704 = vmatmul.mubr.f32.gmra.mxu0 %v632
        %v705 = vpop.f32.mrf.mxu0
        %v706 = vadd.f32 %v625, %v705
        %v707 = vpop.f32.mrf.mxu0
        %708 = vdwg.mxu0
        %v709 = vmax.f32 %v701, 0.0
        %v710 = vmax.f32 %v706, 0.0
        %v711 = vld [vmem:[%s382] sm:$0xf]
        %v712 = vld [vmem:[%s382 + $0x4] sm:$0xf]
        %v713 = vld [vmem:[%s382 + $0x8] sm:$0xf]
        %v714 = vld [vmem:[%s382 + $0xc] sm:$0xf]
        %v715 = vld [vmem:[%s382 + $0x10] sm:$0xf]
        %v716 = vld [vmem:[%s382 + $0x14] sm:$0xf]
        %v717 = vld [vmem:[%s382 + $0x18] sm:$0xf]
        %v718 = vld [vmem:[%s382 + $0x1c] sm:$0xf]
        %v719 = vunpack.c.l.bf16 %v711
        %v720 = vunpack.c.l.bf16 %v712
        %v721 = vunpack.c.l.bf16 %v713
        %v722 = vunpack.c.l.bf16 %v714
        %v723 = vunpack.c.l.bf16 %v715
        %v724 = vunpack.c.l.bf16 %v716
        %v725 = vunpack.c.l.bf16 %v717
        %v726 = vunpack.c.l.bf16 %v718
        %v727 = vld [vmem:[%s6] sm:$0xf]
        %v728 = vmul.f32 %v709, %v719
        %v729 = vmul.f32 %v710, %v720
        %v730 = vmul.f32 %v709, %v721
        %v731 = vmul.f32 %v710, %v722
        %v732 = vmul.f32 %v709, %v723
        %v733 = vmul.f32 %v710, %v724
        %v734 = vmul.f32 %v709, %v725
        %v735 = vmul.f32 %v710, %v726
        %v737 = vsel %vm627, %v727, 0
        %739 = vmatprep.subr.mxu0 0.0
        %740 = vmatpush1.msra.mxu0 0.0
        %741 = vmatprep.subr.mxu0 0.0
        %742 = vmatpush1.msra.mxu0 0.0
        %743 = vmatprep.subr.mxu0 0.0
        %744 = vmatpush1.msra.mxu0 0.0
        %745 = vmatprep.subr.mxu0 0.0
        %746 = vmatpush1.msra.mxu0 0.0
        %747 = vmatprep.subr.mxu0 0.0
        %748 = vmatpush1.msra.mxu0 0.0
        %749 = vmatprep.subr.mxu0 0.0
        %750 = vmatpush1.msra.mxu0 0.0
        %751 = vmatprep.subr.mxu0 0.0
        %752 = vmatpush1.msra.mxu0 0.0
        %753 = vmatprep.subr.mxu0 0.0
        %754 = vmatpush1.msra.mxu0 0.0
        %755 = vmatprep.subr.mxu0 0.0
        %756 = vmatpush1.msra.mxu0 %v735
        %757 = vmatprep.subr.mxu0 0.0
        %758 = vmatpush1.msra.mxu0 %v734
        %759 = vmatprep.subr.mxu0 0.0
        %760 = vmatpush1.msra.mxu0 %v733
        %761 = vmatprep.subr.mxu0 0.0
        %762 = vmatpush1.msra.mxu0 %v732
        %763 = vmatprep.subr.mxu0 0.0
        %764 = vmatpush1.msra.mxu0 %v731
        %765 = vmatprep.subr.mxu0 0.0
        %766 = vmatpush1.msra.mxu0 %v730
        %767 = vmatprep.subr.mxu0 0.0
        %768 = vmatpush1.msra.mxu0 %v729
        %769 = vmatprep.subr.mxu0 0.0
        %770 = vmatpush1.msra.mxu0 %v728
        %771 = vmatprep.subr.mxu0 0.0
        %772 = vmatpush2.msra.mxu0 0.0
        %773 = vmatprep.subr.mxu0 0.0
        %774 = vmatpush2.msra.mxu0 0.0
        %775 = vmatprep.subr.mxu0 0.0
        %776 = vmatpush2.msra.mxu0 0.0
        %777 = vmatprep.subr.mxu0 0.0
        %778 = vmatpush2.msra.mxu0 0.0
        %779 = vmatprep.subr.mxu0 0.0
        %780 = vmatpush2.msra.mxu0 0.0
        %781 = vmatprep.subr.mxu0 0.0
        %782 = vmatpush2.msra.mxu0 0.0
        %783 = vmatprep.subr.mxu0 0.0
        %784 = vmatpush2.msra.mxu0 0.0
        %785 = vmatprep.subr.mxu0 0.0
        %786 = vmatpush2.msra.mxu0 0.0
        %787 = vmatprep.subr.mxu0 0.0
        %788 = vmatpush2.msra.mxu0 0.0
        %789 = vmatprep.subr.mxu0 0.0
        %790 = vmatpush2.msra.mxu0 0.0
        %791 = vmatprep.subr.mxu0 0.0
        %792 = vmatpush2.msra.mxu0 0.0
        %793 = vmatprep.subr.mxu0 0.0
        %794 = vmatpush2.msra.mxu0 0.0
        %795 = vmatprep.subr.mxu0 0.0
        %796 = vmatpush2.msra.mxu0 0.0
        %797 = vmatprep.subr.mxu0 0.0
        %798 = vmatpush2.msra.mxu0 0.0
        %799 = vmatprep.subr.mxu0 0.0
        %800 = vmatpush2.msra.mxu0 0.0
        %801 = vmatprep.subr.mxu0 0.0
        %802 = vmatpush2.msra.mxu0 0.0
        %803 = vmatprep.mubr.f32.mxu0 0.0
        %804 = vmatmul.mubr.f32.gmra.mxu0 %v737
        %v805 = vpop.f32.mrf.mxu0
        %v806 = vadd.f32 0.0, %v805
        %v807 = vpop.f32.mrf.mxu0
        %808 = vdwg.mxu0
        %v809 = vmul.f32 %v719, %v719
        %v810 = vmul.f32 %v720, %v720
        %v811 = vmul.f32 %v721, %v721
        %v812 = vmul.f32 %v722, %v722
        %v813 = vmul.f32 %v723, %v723
        %v814 = vmul.f32 %v724, %v724
        %v815 = vmul.f32 %v725, %v725
        %v816 = vmul.f32 %v726, %v726
        %817 = vmatprep.subr.mxu0 0.0
        %818 = vmatpush1.msra.mxu0 0.0
        %819 = vmatprep.subr.mxu0 0.0
        %820 = vmatpush1.msra.mxu0 0.0
        %821 = vmatprep.subr.mxu0 0.0
        %822 = vmatpush1.msra.mxu0 0.0
        %823 = vmatprep.subr.mxu0 0.0
        %824 = vmatpush1.msra.mxu0 0.0
        %825 = vmatprep.subr.mxu0 0.0
        %826 = vmatpush1.msra.mxu0 0.0
        %827 = vmatprep.subr.mxu0 0.0
        %828 = vmatpush1.msra.mxu0 0.0
        %829 = vmatprep.subr.mxu0 0.0
        %830 = vmatpush1.msra.mxu0 0.0
        %831 = vmatprep.subr.mxu0 0.0
        %832 = vmatpush1.msra.mxu0 0.0
        %833 = vmatprep.subr.mxu0 0.0
        %834 = vmatpush1.msra.mxu0 %v816
        %835 = vmatprep.subr.mxu0 0.0
        %836 = vmatpush1.msra.mxu0 %v815
        %837 = vmatprep.subr.mxu0 0.0
        %838 = vmatpush1.msra.mxu0 %v814
        %839 = vmatprep.subr.mxu0 0.0
        %840 = vmatpush1.msra.mxu0 %v813
        %841 = vmatprep.subr.mxu0 0.0
        %842 = vmatpush1.msra.mxu0 %v812
        %843 = vmatprep.subr.mxu0 0.0
        %844 = vmatpush1.msra.mxu0 %v811
        %845 = vmatprep.subr.mxu0 0.0
        %846 = vmatpush1.msra.mxu0 %v810
        %847 = vmatprep.subr.mxu0 0.0
        %848 = vmatpush1.msra.mxu0 %v809
        %849 = vmatprep.subr.mxu0 0.0
        %850 = vmatpush2.msra.mxu0 0.0
        %851 = vmatprep.subr.mxu0 0.0
        %852 = vmatpush2.msra.mxu0 0.0
        %853 = vmatprep.subr.mxu0 0.0
        %854 = vmatpush2.msra.mxu0 0.0
        %855 = vmatprep.subr.mxu0 0.0
        %856 = vmatpush2.msra.mxu0 0.0
        %857 = vmatprep.subr.mxu0 0.0
        %858 = vmatpush2.msra.mxu0 0.0
        %859 = vmatprep.subr.mxu0 0.0
        %860 = vmatpush2.msra.mxu0 0.0
        %861 = vmatprep.subr.mxu0 0.0
        %862 = vmatpush2.msra.mxu0 0.0
        %863 = vmatprep.subr.mxu0 0.0
        %864 = vmatpush2.msra.mxu0 0.0
        %865 = vmatprep.subr.mxu0 0.0
        %866 = vmatpush2.msra.mxu0 0.0
        %867 = vmatprep.subr.mxu0 0.0
        %868 = vmatpush2.msra.mxu0 0.0
        %869 = vmatprep.subr.mxu0 0.0
        %870 = vmatpush2.msra.mxu0 0.0
        %871 = vmatprep.subr.mxu0 0.0
        %872 = vmatpush2.msra.mxu0 0.0
        %873 = vmatprep.subr.mxu0 0.0
        %874 = vmatpush2.msra.mxu0 0.0
        %875 = vmatprep.subr.mxu0 0.0
        %876 = vmatpush2.msra.mxu0 0.0
        %877 = vmatprep.subr.mxu0 0.0
        %878 = vmatpush2.msra.mxu0 0.0
        %879 = vmatprep.subr.mxu0 0.0
        %880 = vmatpush2.msra.mxu0 0.0
        %881 = vmatprep.mubr.f32.mxu0 0.0
        %882 = vmatmul.mubr.f32.gmra.mxu0 %v737
        %v883 = vpop.f32.mrf.mxu0
        %v884 = vadd.f32 0.0, %v883
        %v885 = vpop.f32.mrf.mxu0
        %886 = vdwg.mxu0
        %v887 = vmul.f32 %v709, %v709
        %v888 = vmul.f32 %v710, %v710
        %v889 = vadd.f32 %v887, %v888
        %v890 = vrot.slane %v889, 4
        %v891 = vadd.f32 %v889, %v890
        %v892 = vrot.slane %v891, 2
        %v893 = vadd.f32 %v891, %v892
        %v894 = vrot.slane %v893, 1
        %v895 = vadd.f32 %v893, %v894
        %v896 = vmul.f32 %v895, %v884
        %v897 = vmax.f32 %v896, 1e-16
        %v898 = vrsqrt.pop %v897
        %v899 = vmul.f32 %v806, %v898
        %v900 = vmul.f32 %v899, 2.0
        %901 = vst [vmem:[%s414] sm:$0xf] %v900
        %s902 = sand.u32 %s186, 1
        %s903 = scalar_lea.sflag [#allocation5], %s902
        %s904 = sand.u32 %s186, 1
        %s905 = smul.addr %s904, 4
        %s906 = scalar_lea.vmem [#allocation4], %s905
        // Predicated region
        $region128: #{tpu_custom_call.1} parent=118 // pred_check
          %p907 = pneg %p196
        $region129: #{tpu_custom_call.1} parent=118 // pred_check_branch
          %909 = sbr.rel (%p907) target = $region131
        $region130: #{tpu_custom_call.1} parent=118 // pred_region
          %s911 = ssub.s32 64, 64
          %912 = vsyncadd %s903, %s911
          %s913 = smul.addr %s21, 64
          %s914 = scalar_lea.hbm %s7, %s913
          %s916 = sshll.u32 %s906, 4
          %s917 = int_to_ptr.vmem [resolvable:$true] %s916
          %919 = dma.vmem_to_hbm [thread:$0]  %s917, 64, %s914, %s903
        $region131: #{tpu_custom_call.1} parent=118 // pred_fallthru
          _
      $region119: #{tpu_custom_call.1} parent=5 // pred_fallthru
        _
      %p920 = scmp.le.s32.totalorder 2, %s16
      // Predicated region
      $region132: #{tpu_custom_call.1} parent=5 // pred_check
        %p921 = pneg %p920
      $region133: #{tpu_custom_call.1} parent=5 // pred_check_branch
        %923 = sbr.rel (%p921) target = $region135
      $region134: #{tpu_custom_call.1} parent=5 // pred_region
        %s924 = ssub.s32 %s16, 2
        // Predicated region
        $region136: #{tpu_custom_call.1} parent=134 // pred_check
          %p925 = pneg %p202
        $region137: #{tpu_custom_call.1} parent=134 // pred_check_branch
          %927 = sbr.rel (%p925) target = $region139
        $region138: #{tpu_custom_call.1} parent=134 // pred_region
          %s928 = sand.u32 %s187, 1
          %s929 = scalar_lea.sflag [#allocation5], %s928
          %s930 = sand.u32 %s187, 1
          %s931 = smul.addr %s930, 4
          %s932 = scalar_lea.vmem [#allocation4], %s931
          %933 = dma.done %s929, 64
        $region139: #{tpu_custom_call.1} parent=134 // pred_fallthru
          _
      $region135: #{tpu_custom_call.1} parent=5 // pred_fallthru
        _
    $region6: #{tpu_custom_call.1} parent=1 // loop_footer
      %s20 = sadd.s32 1, %s16
    $region7: #{tpu_custom_call.1} parent=1 // loop_footer_branch
      %15 = sbr.rel target = $region3
    $region8: #{tpu_custom_call.1} parent=1 // loop_exit
      _
    %934 = vsyncpa [#allocation5], 1
    %s935 = scalar_lea.sflag [#allocation5], 1
    %936 = vsyncpa %s935, 1

</llo_original>
